<compile_context>
chip_gen: v5e
topology: v5e:2x2
jax: 0.10.0
libtpu: 0.0.40
codegen_flags: <defaults>
</compile_context>

<pallas_src>
import functools

import jax
import jax.numpy as jnp
from jax import lax
from jax.experimental import pallas as pl
from jax.experimental.pallas import tpu as pltpu


def _round_up(x, m):
    return ((x + m - 1) // m) * m


def _pick_tile(requested, size, align, *, prefer_two_blocks=False):
    """Clamp a requested tile to the (align-padded) problem size.

    When `prefer_two_blocks` is set and the whole axis would collapse into a
    single block, split it in two so the leading "parallel" grid axis can be
    sharded across both v7x TensorCores (harmless on single-TC v5e/v6e).
    """
    padded = _round_up(size, align)
    tile = min(_round_up(requested, align), padded)
    if prefer_two_blocks and padded > align and _round_up(size, tile) == tile:
        tile = _round_up((padded + 1) // 2, align)
    return tile


def _vmem_limit_bytes():
    # v7x has 64 MiB of VMEM per TensorCore; v5e/v6e have 128 MiB.  3/4 of
    # physical (capped at 96 MiB) leaves compiler headroom everywhere while
    # allowing much larger tiles than the 32 MiB scoped default.
    try:
        cap = int(pltpu.get_tpu_info().vmem_capacity_bytes)
    except Exception:
        cap = 64 * 1024 * 1024
    return min(cap * 3 // 4, 96 * 1024 * 1024)


# ---------------------------------------------------------------------------
# Stage 1 (CSR scatter): sorted two-way edges -> node_agg
# ---------------------------------------------------------------------------
def _scatter_kernel(ebf_ref, neb_ref, idx_ref, edge_ref, out_ref, acc_ref):
    # Edges are pre-sorted by destination node; node block `n` only sees the
    # edge blocks covering its own slice (picked by the scalar-prefetched
    # eb_first table in the index_maps).  `j` walks those blocks; overshoot
    # steps (clamped index_map) are skipped via the n_eb count.
    del ebf_ref  # consumed by the index_maps only
    n = pl.program_id(0)
    j = pl.program_id(1)

    @pl.when(j == 0)
    def _init():
        acc_ref[...] = jnp.zeros_like(acc_ref)

    @pl.when(j < neb_ref[n])
    def _accumulate():
        node_tile = acc_ref.shape[0]
        node_base = n * node_tile
        idx_local = idx_ref[...] - node_base                      # (1, ET)
        rows = lax.broadcasted_iota(jnp.int32, (node_tile, 1), 0)
        # Column-iota broadcast compare; edges outside this node block
        # (straddle from neighbours, sentinel padding) give all-zero rows.
        onehot = (rows == idx_local).astype(edge_ref.dtype)       # (NT, ET)
        acc_ref[...] += jnp.dot(onehot, edge_ref[...],
                                preferred_element_type=jnp.float32)

    @pl.when(j == pl.num_programs(1) - 1)
    def _finish():
        out_ref[...] = acc_ref[...].astype(out_ref.dtype)


# ---------------------------------------------------------------------------
# Stage 2: gather node_agg at the 3 face nodes, average, MLP, LayerNorm
# ---------------------------------------------------------------------------
def _gather_mlp_kernel(out_dim, eps,
                       face_ref, nagg_ref, x_ref,
                       w1x_ref, w1a_ref, b1_ref, w2_ref, b2_ref,
                       gamma_ref, beta_ref, out_ref, agg_ref):
    n_blk = pl.program_id(1)
    node_tile = nagg_ref.shape[0]

    @pl.when(n_blk == 0)
    def _init():
        agg_ref[...] = jnp.zeros_like(agg_ref)

    node_base = n_blk * node_tile
    f_local = face_ref[...] - node_base                           # (CT, 3)
    cols = lax.broadcasted_iota(jnp.int32, (1, node_tile), 1)
    # Summed (not OR'ed) selection so degenerate cells with repeated face
    # nodes still count every occurrence, matching the reference gather.
    sel = ((cols == f_local[:, 0:1]).astype(nagg_ref.dtype)
           + (cols == f_local[:, 1:2]).astype(nagg_ref.dtype)
           + (cols == f_local[:, 2:3]).astype(nagg_ref.dtype))    # (CT, NT)
    agg_ref[...] += jnp.dot(sel, nagg_ref[...],
                            preferred_element_type=jnp.float32)

    @pl.when(n_blk == pl.num_programs(1) - 1)
    def _finish():
        cell_agg = agg_ref[...] * (1.0 / 3.0)                     # (CT, Fh_pad)
        # concat([x, cell_agg]) @ w1  ==  x @ w1[:Fc] + cell_agg @ w1[Fc:]
        h = jnp.maximum(
            jnp.dot(x_ref[...], w1x_ref[...], preferred_element_type=jnp.float32)
            + jnp.dot(cell_agg, w1a_ref[...], preferred_element_type=jnp.float32)
            + b1_ref[...], 0.0)
        y = jnp.dot(h, w2_ref[...], preferred_element_type=jnp.float32) + b2_ref[...]
        # LayerNorm over the true (unpadded) width.  Padded lanes of y are
        # exactly zero (w2/b2 zero-padded), so the mean needs no mask; only
        # the centered values are masked for the variance.
        lane = lax.broadcasted_iota(jnp.int32, y.shape, 1)
        valid = (lane < out_dim).astype(jnp.float32)
        inv_n = 1.0 / out_dim
        mu = jnp.sum(y, axis=-1, keepdims=True) * inv_n
        d = (y - mu) * valid
        var = jnp.sum(d * d, axis=-1, keepdims=True) * inv_n
        out = d * lax.rsqrt(var + eps) * gamma_ref[...] + beta_ref[...]
        out_ref[...] = out.astype(out_ref.dtype)


# ---------------------------------------------------------------------------
# Wrapper reproducing CellBlock.forward (mp_times >= 2, dual_edge=False path)
# ---------------------------------------------------------------------------
def cell_block_forward(edge_attr, x, cell_edge_index, node_edge_index, face,
                       params, num_nodes, mp_times=2, dual_edge=False, *,
                       node_tile=1024, edge_tile=2048, cell_tile=512,
                       mxu_dtype=jnp.bfloat16, eps=1e-5):
    if mp_times < 2:
        # TODO(synk): mp_times < 2 path (scatter straight to cells) not wired up.
        raise NotImplementedError("only mp_times >= 2 path implemented")
    if dual_edge:
        # TODO(synk): dual_edge=True path (edge_attr already has 2E rows) not wired up.
        raise NotImplementedError("only dual_edge=False path implemented")

    num_edges, f_edge = edge_attr.shape
    assert f_edge % 2 == 0, "edge feature dim must be even (chunk into 2 halves)"
    f_half = f_edge // 2
    num_cells, f_cell = x.shape
    hidden = params["w1"].shape[1]
    out_dim = params["w2"].shape[1]
    assert params["w1"].shape[0] == f_cell + f_half

    f_half_pad = _round_up(f_half, 128)    # lane-dense node_agg / cell_agg
    h_pad = _round_up(hidden, 128)
    o_pad = _round_up(out_dim, 128)

    # ---- tile sizes (node tiles 16-aligned for packed bf16 sublanes)
    node_tile = _pick_tile(node_tile, num_nodes, 16, prefer_two_blocks=True)
    cell_tile = _pick_tile(cell_tile, num_cells, 8, prefer_two_blocks=True)
    two_e = 2 * num_edges
    edge_tile = min(_round_up(edge_tile, 128), _round_up(two_e, 128))
    n_pad = _round_up(num_nodes, node_tile)
    c_pad = _round_up(num_cells, cell_tile)
    e2_pad = _round_up(two_e, edge_tile)
    num_nb = n_pad // node_tile
    num_eb = e2_pad // edge_tile

    # ---- two-way edge list sorted by destination mesh node (CSR form)
    ea = edge_attr.astype(jnp.float32)
    idx2 = jnp.concatenate([node_edge_index[0], node_edge_index[1]]).astype(jnp.int32)
    twoway = jnp.concatenate([ea[:, :f_half], ea[:, f_half:]], axis=0)   # (2E, Fh)
    order = jnp.argsort(idx2)
    sidx = idx2[order]                                                   # ascending
    sedge = jnp.pad(twoway[order],
                    ((0, e2_pad - two_e), (0, f_half_pad - f_half))).astype(mxu_dtype)
    sidx_p = jnp.pad(sidx, (0, e2_pad - two_e),
                     constant_values=2 ** 30).reshape(1, e2_pad)          # sentinel

    # Per-node-block edge-block coverage (scalar-prefetched to SMEM).
    # TODO(synk): computed eagerly (needs concrete values); under jit these
    # offsets / the max-blocks bound must be passed in explicitly.
    bounds = jnp.arange(num_nb + 1, dtype=jnp.int32) * node_tile
    pos = jnp.searchsorted(sidx, bounds).astype(jnp.int32)                # (num_nb+1,)
    starts, ends = pos[:-1], pos[1:]
    eb_first = jnp.minimum(starts // edge_tile, num_eb - 1).astype(jnp.int32)
    n_eb = jnp.where(ends > starts,
                     (ends - 1) // edge_tile - starts // edge_tile + 1,
                     0).astype(jnp.int32)
    max_eb_per_nb = max(int(jnp.max(n_eb)), 1)

    # ---- pad cell-side tensors (indices -> -1 never match; features -> 0)
    face_t = jnp.pad(face.T.astype(jnp.int32),
                     ((0, c_pad - num_cells), (0, 0)), constant_values=-1)  # (Cp, 3)
    x_p = jnp.pad(x.astype(jnp.float32), ((0, c_pad - num_cells), (0, 0)))  # (Cp, Fc)

    # ---- pad MLP / LayerNorm params to lane-dense (multiple-of-128) widths
    w1 = params["w1"].astype(jnp.float32)
    w1x = jnp.pad(w1[:f_cell], ((0, 0), (0, h_pad - hidden)))               # (Fc, Hp)
    w1a = jnp.pad(w1[f_cell:], ((0, f_half_pad - f_half), (0, h_pad - hidden)))
    b1 = jnp.pad(params["b1"].astype(jnp.float32).reshape(1, hidden),
                 ((0, 0), (0, h_pad - hidden)))
    w2 = jnp.pad(params["w2"].astype(jnp.float32),
                 ((0, h_pad - hidden), (0, o_pad - out_dim)))               # (Hp, Op)
    b2 = jnp.pad(params["b2"].astype(jnp.float32).reshape(1, out_dim),
                 ((0, 0), (0, o_pad - out_dim)))
    gamma = jnp.pad(params["gamma"].astype(jnp.float32).reshape(1, out_dim),
                    ((0, 0), (0, o_pad - out_dim)))
    beta = jnp.pad(params["beta"].astype(jnp.float32).reshape(1, out_dim),
                   ((0, 0), (0, o_pad - out_dim)))

    cparams = pltpu.CompilerParams(
        dimension_semantics=("parallel", "arbitrary"),
        vmem_limit_bytes=_vmem_limit_bytes())

    # ---- stage 1: CSR scatter edges -> nodes
    def _eb(n, j, ebf, neb):
        del neb
        return jnp.minimum(ebf[n] + j, num_eb - 1)

    node_agg = pl.pallas_call(
        _scatter_kernel,
        out_shape=jax.ShapeDtypeStruct((n_pad, f_half_pad), mxu_dtype),
        grid_spec=pltpu.PrefetchScalarGridSpec(
            num_scalar_prefetch=2,
            grid=(num_nb, max_eb_per_nb),
            in_specs=[
                pl.BlockSpec((1, edge_tile),
                             lambda n, j, ebf, neb: (0, _eb(n, j, ebf, neb))),
                pl.BlockSpec((edge_tile, f_half_pad),
                             lambda n, j, ebf, neb: (_eb(n, j, ebf, neb), 0)),
            ],
            out_specs=pl.BlockSpec((node_tile, f_half_pad),
                                   lambda n, j, ebf, neb: (n, 0)),
            scratch_shapes=[pltpu.VMEM((node_tile, f_half_pad), jnp.float32)]),
        compiler_params=cparams,
    )(eb_first, n_eb, sidx_p, sedge)

    # ---- stage 2: gather nodes -> cells, MLP, LayerNorm
    out_pad = pl.pallas_call(
        functools.partial(_gather_mlp_kernel, out_dim, eps),
        out_shape=jax.ShapeDtypeStruct((c_pad, o_pad), jnp.float32),
        grid=(c_pad // cell_tile, n_pad // node_tile),
        in_specs=[
            pl.BlockSpec((cell_tile, 3), lambda c, n: (c, 0)),        # face (C,3)
            pl.BlockSpec((node_tile, f_half_pad), lambda c, n: (n, 0)),  # node_agg
            pl.BlockSpec((cell_tile, f_cell), lambda c, n: (c, 0)),   # x
            pl.BlockSpec((f_cell, h_pad), lambda c, n: (0, 0)),       # w1 (x rows)
            pl.BlockSpec((f_half_pad, h_pad), lambda c, n: (0, 0)),   # w1 (agg rows)
            pl.BlockSpec((1, h_pad), lambda c, n: (0, 0)),            # b1
            pl.BlockSpec((h_pad, o_pad), lambda c, n: (0, 0)),        # w2
            pl.BlockSpec((1, o_pad), lambda c, n: (0, 0)),            # b2
            pl.BlockSpec((1, o_pad), lambda c, n: (0, 0)),            # gamma
            pl.BlockSpec((1, o_pad), lambda c, n: (0, 0)),            # beta
        ],
        out_specs=pl.BlockSpec((cell_tile, o_pad), lambda c, n: (c, 0)),
        scratch_shapes=[pltpu.VMEM((cell_tile, f_half_pad), jnp.float32)],
        compiler_params=cparams,
    )(face_t, node_agg, x_p, w1x, w1a, b1, w2, b2, gamma, beta)

    out_x = out_pad[:num_cells, :out_dim]
    # Data(x=x, edge_attr=edge_attr, edge_index=graph.edge_index)
    return {"x": out_x, "edge_attr": edge_attr, "edge_index": cell_edge_index}


# ---------------------------------------------------------------------------
# Pure-JAX reference (matches the PyTorch module semantics, f32 everywhere)
# ---------------------------------------------------------------------------
def _reference(edge_attr, x, node_edge_index, face, params, num_nodes):
    half_a, half_b = jnp.split(edge_attr, 2, axis=-1)
    two_edge = jnp.concatenate([half_a, half_b], axis=0)
    twoway_idx = jnp.concatenate([node_edge_index[0], node_edge_index[1]], axis=0)
    node_agg = jax.ops.segment_sum(two_edge, twoway_idx, num_segments=num_nodes)
    cell_agg = (node_agg[face[0]] + node_agg[face[1]] + node_agg[face[2]]) / 3.0
    collected = jnp.concatenate([x, cell_agg], axis=-1)
    h = jnp.maximum(collected @ params["w1"] + params["b1"], 0.0)
    y = h @ params["w2"] + params["b2"]
    mu = jnp.mean(y, axis=-1, keepdims=True)
    var = jnp.mean((y - mu) ** 2, axis=-1, keepdims=True)
    return (y - mu) * lax.rsqrt(var + 1e-5) * params["gamma"] + params["beta"]


if __name__ == "__main__":
    key = jax.random.PRNGKey(0)
    k = jax.random.split(key, 8)

    # Small shapes chosen so the tiny-tile run exercises multiple node / edge /
    # cell blocks (CSR straddle, clamped overshoot steps, accumulation).
    num_cells = 48     # graph.num_nodes (cells)
    num_nodes = 40     # graph_node.num_nodes (mesh vertices)
    num_edges = 160
    f_edge = 16        # edge_attr feature dim (chunks of 8)
    f_cell = 8         # graph.x feature dim
    hidden = 32
    out_dim = 32
    in_dim = f_cell + f_edge // 2   # concat(x, cell_agg) = 8 + 8 = 16

    edge_attr = jax.random.normal(k[0], (num_edges, f_edge), jnp.float32)
    cell_x = jax.random.normal(k[1], (num_cells, f_cell), jnp.float32)
    cell_edge_index = jax.random.randint(k[2], (2, num_edges), 0, num_cells, jnp.int32)
    node_edge_index = jax.random.randint(k[3], (2, num_edges), 0, num_nodes, jnp.int32)
    face = jax.random.randint(k[4], (3, num_cells), 0, num_nodes, jnp.int32)

    params = {
        "w1": jax.random.normal(k[5], (in_dim, hidden), jnp.float32) * 0.1,
        "b1": jnp.zeros((1, hidden), jnp.float32),
        "w2": jax.random.normal(k[6], (hidden, out_dim), jnp.float32) * 0.1,
        "b2": jnp.zeros((1, out_dim), jnp.float32),
        "gamma": jnp.ones((1, out_dim), jnp.float32),
        "beta": jnp.zeros((1, out_dim), jnp.float32),
    }

    ref = _reference(edge_attr, cell_x, node_edge_index, face, params, num_nodes)

    # Exact-math path (f32 MXU operands) with deliberately tiny tiles: strict
    # check of the CSR tiling / straddle / accumulation semantics.
    res32 = cell_block_forward(edge_attr, cell_x, cell_edge_index, node_edge_index,
                               face, params, num_nodes,
                               node_tile=16, edge_tile=128, cell_tile=16,
                               mxu_dtype=jnp.float32)
    out32 = jax.block_until_ready(res32["x"])
    assert out32.shape == (num_cells, out_dim)
    assert jnp.allclose(out32, ref, atol=1e-4, rtol=1e-4), "f32 path mismatch vs reference"

    # Performance path: default tiles, bf16 streaming / MXU operands with f32
    # accumulation -> small (~1e-2-level) deviation vs the f32 reference.
    res16 = cell_block_forward(edge_attr, cell_x, cell_edge_index, node_edge_index,
                               face, params, num_nodes)
    out16 = jax.block_until_ready(res16["x"])
    assert out16.shape == (num_cells, out_dim)
    assert jnp.allclose(out16, ref, atol=5e-2, rtol=5e-2), "bf16 path mismatch vs reference"

    print("KERNEL_OK")
</pallas_src>

<mosaic_0001>
module attributes {stable_mosaic.version = 11 : i64} {
  func.func @_scatter_kernel(%arg0: i32, %arg1: i32, %arg2: memref<3xi32, #tpu.memory_space<smem>>, %arg3: memref<3xi32, #tpu.memory_space<smem>>, %arg4: memref<1x128xi32, #tpu.memory_space<vmem>>, %arg5: memref<128x128xf32, #tpu.memory_space<vmem>>, %arg6: memref<16x128xf32, #tpu.memory_space<vmem>>, %arg7: memref<16x128xf32, #tpu.memory_space<vmem>>) attributes {dimension_semantics = [#tpu.dimension_semantics<parallel>, #tpu.dimension_semantics<arbitrary>], iteration_bounds = array<i64: 3, 2>, scalar_prefetch = 2 : i64, scratch_operands = 1 : i64, tpu.core_type = #tpu.core_type<tc>, window_params = [{transform_indices = @transform_0, window_bounds = array<i64: 1, 128>}, {transform_indices = @transform_1, window_bounds = array<i64: 128, 128>}, {transform_indices = @transform_2, window_bounds = array<i64: 16, 128>}]} {
    %c0_i32 = arith.constant 0 : i32
    %0 = arith.cmpi eq, %arg1, %c0_i32 : i32
    %1 = arith.extui %0 : i1 to i32
    %c0_i32_0 = arith.constant 0 : i32
    %2 = arith.cmpi ne, %1, %c0_i32_0 : i32
    scf.if %2 {
      %cst = arith.constant 0.000000e+00 : f32
      %11 = vector.broadcast %cst : f32 to vector<16x128xf32>
      %c0 = arith.constant 0 : index
      %c0_3 = arith.constant 0 : index
      %12 = vector.load %arg7[%c0, %c0_3] : memref<16x128xf32, #tpu.memory_space<vmem>>, vector<16x128xf32>
      tpu.vector_store %arg7[%c0, %c0_3], %11 {strides = array<i32>} : memref<16x128xf32, #tpu.memory_space<vmem>>, vector<16x128xf32>,
    } else {
    }
    %3 = arith.index_cast %arg0 : i32 to index
    %4 = memref.load %arg3[%3] : memref<3xi32, #tpu.memory_space<smem>>
    %5 = arith.cmpi slt, %arg1, %4 : i32
    %6 = arith.extui %5 : i1 to i32
    %c0_i32_1 = arith.constant 0 : i32
    %7 = arith.cmpi ne, %6, %c0_i32_1 : i32
    scf.if %7 {
      %c16_i32 = arith.constant 16 : i32
      %11 = arith.muli %arg0, %c16_i32 : i32
      %c0 = arith.constant 0 : index
      %c0_3 = arith.constant 0 : index
      %12 = vector.load %arg4[%c0, %c0_3] : memref<1x128xi32, #tpu.memory_space<vmem>>, vector<1x128xi32>
      %13 = vector.broadcast %11 : i32 to vector<1x128xi32>
      %14 = arith.subi %12, %13 : vector<1x128xi32>
      %15 = tpu.iota {dimensions = array<i32: 0>} : vector<16x1xi32>
      %16 = vector.broadcast %15 : vector<16x1xi32> to vector<16x128xi32>
      %17 = vector.broadcast %14 : vector<1x128xi32> to vector<16x128xi32>
      %18 = arith.cmpi eq, %16, %17 : vector<16x128xi32>
      %19 = arith.extui %18 : vector<16x128xi1> to vector<16x128xi32>
      %20 = arith.sitofp %19 : vector<16x128xi32> to vector<16x128xf32>
      %c0_4 = arith.constant 0 : index
      %c0_5 = arith.constant 0 : index
      %21 = vector.load %arg7[%c0_4, %c0_5] : memref<16x128xf32, #tpu.memory_space<vmem>>, vector<16x128xf32>
      %c0_6 = arith.constant 0 : index
      %c0_7 = arith.constant 0 : index
      %22 = vector.load %arg5[%c0_6, %c0_7] : memref<128x128xf32, #tpu.memory_space<vmem>>, vector<128x128xf32>
      %cst = arith.constant dense<0.000000e+00> : vector<16x128xf32>
      %23 = tpu.matmul %20, %22, %cst {dimension_numbers = #tpu.dot_dimension_numbers<[1], [0], [0], [1], [0, 0, 1, 1], [], []>} : vector<16x128xf32>, vector<128x128xf32>, vector<16x128xf32> -> vector<16x128xf32>
      %24 = arith.addf %21, %23 : vector<16x128xf32>
      %c0_8 = arith.constant 0 : index
      %c0_9 = arith.constant 0 : index
      %25 = vector.load %arg7[%c0_8, %c0_9] : memref<16x128xf32, #tpu.memory_space<vmem>>, vector<16x128xf32>
      tpu.vector_store %arg7[%c0_8, %c0_9], %24 {strides = array<i32>} : memref<16x128xf32, #tpu.memory_space<vmem>>, vector<16x128xf32>,
    } else {
    }
    %c1_i32 = arith.constant 1 : i32
    %8 = arith.cmpi eq, %arg1, %c1_i32 : i32
    %9 = arith.extui %8 : i1 to i32
    %c0_i32_2 = arith.constant 0 : i32
    %10 = arith.cmpi ne, %9, %c0_i32_2 : i32
    scf.if %10 {
      %c0 = arith.constant 0 : index
      %c0_3 = arith.constant 0 : index
      %11 = vector.load %arg7[%c0, %c0_3] : memref<16x128xf32, #tpu.memory_space<vmem>>, vector<16x128xf32>
      %c0_4 = arith.constant 0 : index
      %c0_5 = arith.constant 0 : index
      %12 = vector.load %arg6[%c0_4, %c0_5] : memref<16x128xf32, #tpu.memory_space<vmem>>, vector<16x128xf32>
      tpu.vector_store %arg6[%c0_4, %c0_5], %11 {strides = array<i32>} : memref<16x128xf32, #tpu.memory_space<vmem>>, vector<16x128xf32>,
    } else {
    }
    return
  }
  func.func @transform_0(%arg0: i32, %arg1: i32, %arg2: memref<3xi32, #tpu.memory_space<smem>>, %arg3: memref<3xi32, #tpu.memory_space<smem>>) -> (i32, i32) {
    %0 = arith.index_cast %arg0 : i32 to index
    %1 = memref.load %arg2[%0] : memref<3xi32, #tpu.memory_space<smem>>
    %2 = arith.addi %1, %arg1 : i32
    %c2_i32 = arith.constant 2 : i32
    %3 = arith.minsi %2, %c2_i32 : i32
    %c0_i32 = arith.constant 0 : i32
    %c0_i32_0 = arith.constant 0 : i32
    return %c0_i32, %3 : i32, i32
  }
  func.func @transform_1(%arg0: i32, %arg1: i32, %arg2: memref<3xi32, #tpu.memory_space<smem>>, %arg3: memref<3xi32, #tpu.memory_space<smem>>) -> (i32, i32) {
    %0 = arith.index_cast %arg0 : i32 to index
    %1 = memref.load %arg2[%0] : memref<3xi32, #tpu.memory_space<smem>>
    %2 = arith.addi %1, %arg1 : i32
    %c2_i32 = arith.constant 2 : i32
    %3 = arith.minsi %2, %c2_i32 : i32
    %c0_i32 = arith.constant 0 : i32
    %c0_i32_0 = arith.constant 0 : i32
    return %3, %c0_i32 : i32, i32
  }
  func.func @transform_2(%arg0: i32, %arg1: i32, %arg2: memref<3xi32, #tpu.memory_space<smem>>, %arg3: memref<3xi32, #tpu.memory_space<smem>>) -> (i32, i32) {
    %c0_i32 = arith.constant 0 : i32
    %c0_i32_0 = arith.constant 0 : i32
    return %arg0, %c0_i32 : i32, i32
  }
}

</mosaic_0001>

<llo_original>
// kernel: tpu_custom_call.1
$region0: #{tpu_custom_call.1}
  #allocation0 [shape = 'u32[]', space=smem, size = 0x4, offset = 0x4, fixed_abs, tag = 'smem constant byte address 0x4 - core index']
  #allocation1 [shape = 'u32[72,128]{1,0:T(1,128)}', space=vmem, size = 0x9000, scoped, tag = 'internal scratch']
  #allocation2 [shape = 'f32[16,128]{1,0:T(8,128)}', space=vmem, size = 0x2000, scoped, tag = 'scratch operand']
  #allocation3 [shape = 's32[1]{0}', space=sflag, size = 0x4, scoped, tag = 'scoped memory for tpu_custom_call.1']
  #allocation4 [shape = 'u8[512]{0}', space=smem, size = 0x200, scoped, tag = 'prefetched SMEM operand 0']
  #allocation5 [shape = 'u8[512]{0}', space=smem, size = 0x200, scoped, tag = 'prefetched SMEM operand 1']
  %s0 = inlined_call_operand.hbm [shape: s32[3], index: 0, kind: input, shape index: {}]
  %s1 = inlined_call_operand.hbm [shape: s32[3], index: 1, kind: input, shape index: {}]
  %s2 = inlined_call_operand.hbm [shape: s32[1,384], index: 2, kind: input, shape index: {}]
  %s3 = inlined_call_operand.hbm [shape: f32[384,128], index: 3, kind: input, shape index: {}]
  %s4 = inlined_call_operand.hbm [shape: f32[48,128], index: 4, kind: output, shape index: {}]
  %s5 = sld [smem:[#allocation0]]
  $region61: #{tpu_custom_call.1} parent=0
    _
  %s7 = ssub.s32 1, %s5
  %s8 = scalar_select 0, %s7, %s5
  %s10 = sshll.u32 %s0, 4
  %s11 = int_to_ptr.hbm [resolvable:$true] %s10
  %13 = dma.hbm_to_smem %s11, 16, [#allocation4], [#allocation3]
  %s15 = sshll.u32 %s1, 4
  %s16 = int_to_ptr.hbm [resolvable:$true] %s15
  %18 = dma.hbm_to_smem %s16, 16, [#allocation5], [#allocation3]
  %20 = dma.done [#allocation3], 32
  %21 = sfence
  $region1: #{tpu_custom_call.1} parent=0
    #allocation6 [shape = 'u8[1024]{0}', space=vmem, size = 0x400, scoped, tag = 'input window, operand 2']
    #allocation7 [shape = 's32[2]{0}', space=sflag, size = 0x8, scoped, tag = 'scoped memory for tpu_custom_call.1']
    #allocation8 [shape = 's32[2]{0}', space=sflag, size = 0x8, scoped, tag = 'scoped memory for tpu_custom_call.1']
    #allocation9 [shape = 'u8[131072]{0}', space=vmem, size = 0x20000, scoped, tag = 'input window, operand 3']
    #allocation10 [shape = 's32[2]{0}', space=sflag, size = 0x8, scoped, tag = 'scoped memory for tpu_custom_call.1']
    #allocation11 [shape = 'u8[16384]{0}', space=vmem, size = 0x4000, scoped, tag = 'output window, operand 0']
    %22 = vsyncpa [#allocation7], 0
    %s23 = scalar_lea.sflag [#allocation7], 1
    %24 = vsyncpa %s23, 0
    %25 = vsyncpa [#allocation10], 0
    %s26 = scalar_lea.sflag [#allocation10], 1
    %27 = vsyncpa %s26, 0
    %28 = vsyncpa [#allocation8], 0
    %s29 = scalar_lea.sflag [#allocation8], 1
    %30 = vsyncpa %s29, 0
    loop: start=0, step=1, limit=8
    $region2: #{tpu_custom_call.1} parent=1 // loop_pre_header
      _
    $region3: #{tpu_custom_call.1} parent=1 // loop_header
      %s32 = sphi 0, %s36
      %p33 = scmp.ge.s32.totalorder %s32, 8
      %s39 = sphi 0, %s51
      %s40 = sphi 0, %s47
      %s41 = sphi 0, %s39
      %s42 = sphi 0, %s40
      %s43 = sphi 0, %s41
      %s44 = sphi 0, %s42
      %s62 = sphi 0, %s64
      %s65 = sphi 0, %s62
      %s66 = sphi 0, %s65
      %s82 = sphi 0, %s66
      %s96 = sphi 0, %s98
      %s99 = sphi 0, %s96
      %s100 = sphi 0, %s99
      %s116 = sphi 0, %s100
      %s122 = sphi 0, %s124
      %s125 = sphi 0, %s122
      %s126 = sphi 0, %s125
      %s142 = sphi 0, %s126
    $region4: #{tpu_custom_call.1} parent=1 // loop_header_branch
      %35 = sbr.rel (%p33) target = $region8
    $region5: #{tpu_custom_call.1} parent=1 // loop_body
      %s37 = ssub.s32 %s32, 1
      %s38 = ssub.s32 %s32, 2
      %s45 = sadd.s32 1, %s40
      %p46 = scmp.ge.s32.totalorder %s45, 2
      %s47 = scalar_select %p46, 0, %s45
      %s48 = sadd.s32 1, %s39
      %s49 = scalar_select %p46, %s48, %s39
      %p50 = scmp.ge.s32.totalorder %s49, 3
      %s51 = scalar_select %p50, 0, %s49
      %s52 = sld [smem:[#allocation4 + %s39]]
      %s53 = sadd.s32 %s52, %s40
      %p54 = scmp.lt.s32.totalorder %s53, 2
      %s55 = scalar_select %p54, %s53, 2
      %s56 = sld [smem:[#allocation4 + %s51]]
      %s57 = sadd.s32 %s56, %s47
      %p58 = scmp.lt.s32.totalorder %s57, 2
      %s59 = scalar_select %p58, %s57, 2
      %s60 = ssub.s32 %s55, %s59
      %p61 = scmp.eq.s32.totalorder %s60, 0
      %s63 = sadd.s32 %s62, 1
      %s64 = scalar_select %p61, %s62, %s63
      %p67 = pneg %p61
      %p68 = scmp.eq.s32.totalorder %s32, 5
      %p69 = por %p67, %p68
      %p70 = scmp.ne.s32.totalorder %s62, %s65
      %p71 = scmp.eq.s32.totalorder %s32, 0
      %p72 = por %p70, %p71
      %p73 = scmp.ne.s32.totalorder %s62, %s65
      %p74 = scmp.eq.s32.totalorder %s37, 5
      %p75 = por %p73, %p74
      %p76 = scmp.ne.s32.totalorder %s65, %s66
      %p77 = scmp.eq.s32.totalorder %s37, 0
      %p78 = por %p76, %p77
      %p79 = scmp.ne.s32.totalorder %s65, %s66
      %p80 = scmp.eq.s32.totalorder %s38, 5
      %p81 = por %p79, %p80
      %p83 = scmp.ne.s32.totalorder %s66, %s82
      %p84 = scmp.eq.s32.totalorder %s38, 0
      %p85 = por %p83, %p84
      %s86 = sld [smem:[#allocation4 + %s39]]
      %s87 = sadd.s32 %s86, %s40
      %p88 = scmp.lt.s32.totalorder %s87, 2
      %s89 = scalar_select %p88, %s87, 2
      %s90 = sld [smem:[#allocation4 + %s51]]
      %s91 = sadd.s32 %s90, %s47
      %p92 = scmp.lt.s32.totalorder %s91, 2
      %s93 = scalar_select %p92, %s91, 2
      %s94 = ssub.s32 %s89, %s93
      %p95 = scmp.eq.s32.totalorder %s94, 0
      %s97 = sadd.s32 %s96, 1
      %s98 = scalar_select %p95, %s96, %s97
      %p101 = pneg %p95
      %p102 = scmp.eq.s32.totalorder %s32, 5
      %p103 = por %p101, %p102
      %p104 = scmp.ne.s32.totalorder %s96, %s99
      %p105 = scmp.eq.s32.totalorder %s32, 0
      %p106 = por %p104, %p105
      %p107 = scmp.ne.s32.totalorder %s96, %s99
      %p108 = scmp.eq.s32.totalorder %s37, 5
      %p109 = por %p107, %p108
      %p110 = scmp.ne.s32.totalorder %s99, %s100
      %p111 = scmp.eq.s32.totalorder %s37, 0
      %p112 = por %p110, %p111
      %p113 = scmp.ne.s32.totalorder %s99, %s100
      %p114 = scmp.eq.s32.totalorder %s38, 5
      %p115 = por %p113, %p114
      %p117 = scmp.ne.s32.totalorder %s100, %s116
      %p118 = scmp.eq.s32.totalorder %s38, 0
      %p119 = por %p117, %p118
      %s120 = ssub.s32 %s39, %s51
      %p121 = scmp.eq.s32.totalorder %s120, 0
      %s123 = sadd.s32 %s122, 1
      %s124 = scalar_select %p121, %s122, %s123
      %p127 = pneg %p121
      %p128 = scmp.eq.s32.totalorder %s32, 5
      %p129 = por %p127, %p128
      %p130 = scmp.ne.s32.totalorder %s122, %s125
      %p131 = scmp.eq.s32.totalorder %s32, 0
      %p132 = por %p130, %p131
      %p133 = scmp.ne.s32.totalorder %s122, %s125
      %p134 = scmp.eq.s32.totalorder %s37, 5
      %p135 = por %p133, %p134
      %p136 = scmp.ne.s32.totalorder %s125, %s126
      %p137 = scmp.eq.s32.totalorder %s37, 0
      %p138 = por %p136, %p137
      %p139 = scmp.ne.s32.totalorder %s125, %s126
      %p140 = scmp.eq.s32.totalorder %s38, 5
      %p141 = por %p139, %p140
      %p143 = scmp.ne.s32.totalorder %s126, %s142
      %p144 = scmp.eq.s32.totalorder %s38, 0
      %p145 = por %p143, %p144
      %p146 = scmp.le.s32.totalorder 1, %s32
      %p147 = scmp.lt.s32.totalorder %s32, 7
      %p148 = pnand %p146, %p147
      %p149 = pneg %p148
      // Predicated region
      $region9: #{tpu_custom_call.1} parent=5 // pred_check
        _
      $region10: #{tpu_custom_call.1} parent=5 // pred_check_branch
        %151 = sbr.rel (%p148) target = $region12
      $region11: #{tpu_custom_call.1} parent=5 // pred_region
        %s152 = ssub.s32 %s32, 1
      $region12: #{tpu_custom_call.1} parent=5 // pred_fallthru
        _
      %p153 = scmp.lt.s32.totalorder %s32, 6
      // Predicated region
      $region13: #{tpu_custom_call.1} parent=5 // pred_check
        %p154 = pneg %p153
      $region14: #{tpu_custom_call.1} parent=5 // pred_check_branch
        %156 = sbr.rel (%p154) target = $region16
      $region15: #{tpu_custom_call.1} parent=5 // pred_region
        // Predicated region
        $region17: #{tpu_custom_call.1} parent=15 // pred_check
          %p157 = pneg %p72
        $region18: #{tpu_custom_call.1} parent=15 // pred_check_branch
          %159 = sbr.rel (%p157) target = $region20
        $region19: #{tpu_custom_call.1} parent=15 // pred_region
          %s160 = sand.u32 %s62, 1
          %s161 = scalar_lea.sflag [#allocation7], %s160
          %s162 = sand.u32 %s62, 1
          %s163 = scalar_lea.vmem [#allocation6], %s162
          %s164 = sld [smem:[#allocation4 + %s39]]
          %s165 = sadd.s32 %s164, %s40
          %p166 = scmp.lt.s32.totalorder %s165, 2
          %s167 = scalar_select %p166, %s165, 2
          %169 = vsyncadd %s161, 0
          %s170 = scalar_lea.hbm %s2, %s167
          %s172 = sshll.u32 %s170, 4
          %s173 = int_to_ptr.hbm [resolvable:$true] %s172
          %s174 = sshll.u32 %s163, 4
          %s175 = int_to_ptr.vmem [resolvable:$true] %s174
          %177 = dma.hbm_to_vmem [thread:$0]  %s173, 16, %s175, %s161
        $region20: #{tpu_custom_call.1} parent=15 // pred_fallthru
          _
        // Predicated region
        $region21: #{tpu_custom_call.1} parent=15 // pred_check
          %p178 = pneg %p106
        $region22: #{tpu_custom_call.1} parent=15 // pred_check_branch
          %180 = sbr.rel (%p178) target = $region24
        $region23: #{tpu_custom_call.1} parent=15 // pred_region
          %s181 = sand.u32 %s96, 1
          %s182 = scalar_lea.sflag [#allocation10], %s181
          %s183 = sand.u32 %s96, 1
          %s184 = smul.addr %s183, 128
          %s185 = scalar_lea.vmem [#allocation9], %s184
          %s186 = sld [smem:[#allocation4 + %s39]]
          %s187 = sadd.s32 %s186, %s40
          %p188 = scmp.lt.s32.totalorder %s187, 2
          %s189 = scalar_select %p188, %s187, 2
          %s190 = smul.u32 16, %s189
          %192 = vsyncadd %s182, 0
          %s193 = smul.addr %s190, 8
          %s194 = scalar_lea.hbm %s3, %s193
          %s195 = sshll.u32 %s194, 4
          %s196 = int_to_ptr.hbm [resolvable:$true] %s195
          %s197 = sshll.u32 %s185, 4
          %s198 = int_to_ptr.vmem [resolvable:$true] %s197
          %203 = dma.hbm_to_vmem [thread:$0]  %s196, 2048, %s198, %s182, 128, 128, 8
        $region24: #{tpu_custom_call.1} parent=15 // pred_fallthru
          _
      $region16: #{tpu_custom_call.1} parent=5 // pred_fallthru
        _
      %p204 = scmp.le.s32.totalorder 1, %s32
      %p205 = scmp.lt.s32.totalorder %s32, 7
      %p206 = pnand %p204, %p205
      %p207 = pneg %p206
      // Predicated region
      $region25: #{tpu_custom_call.1} parent=5 // pred_check
        _
      $region26: #{tpu_custom_call.1} parent=5 // pred_check_branch
        %209 = sbr.rel (%p206) target = $region28
      $region27: #{tpu_custom_call.1} parent=5 // pred_region
        %s210 = ssub.s32 %s32, 1
        %s211 = sand.u32 %s65, 1
        %s212 = scalar_lea.sflag [#allocation7], %s211
        %s213 = sand.u32 %s65, 1
        %s214 = scalar_lea.vmem [#allocation6], %s213
        // Predicated region
        $region29: #{tpu_custom_call.1} parent=27 // pred_check
          %p215 = pneg %p78
        $region30: #{tpu_custom_call.1} parent=27 // pred_check_branch
          %217 = sbr.rel (%p215) target = $region32
        $region31: #{tpu_custom_call.1} parent=27 // pred_region
          %219 = dma.done %s212, 16
        $region32: #{tpu_custom_call.1} parent=27 // pred_fallthru
          _
        %s220 = sand.u32 %s99, 1
        %s221 = scalar_lea.sflag [#allocation10], %s220
        %s222 = sand.u32 %s99, 1
        %s223 = smul.addr %s222, 128
        %s224 = scalar_lea.vmem [#allocation9], %s223
        // Predicated region
        $region33: #{tpu_custom_call.1} parent=27 // pred_check
          %p225 = pneg %p112
        $region34: #{tpu_custom_call.1} parent=27 // pred_check_branch
          %227 = sbr.rel (%p225) target = $region36
        $region35: #{tpu_custom_call.1} parent=27 // pred_region
          %229 = dma.done %s221, 2048
        $region36: #{tpu_custom_call.1} parent=27 // pred_fallthru
          _
        %s230 = sand.u32 %s65, 1
        %s231 = scalar_lea.sflag [#allocation7], %s230
        %s232 = sand.u32 %s65, 1
        %s233 = scalar_lea.vmem [#allocation6], %s232
        %p234 = pneg %p78
        %p235 = pneg %p75
        %s236 = sand.u32 %s99, 1
        %s237 = scalar_lea.sflag [#allocation10], %s236
        %s238 = sand.u32 %s99, 1
        %s239 = smul.addr %s238, 128
        %s240 = scalar_lea.vmem [#allocation9], %s239
        %p241 = pneg %p112
        %p242 = pneg %p109
        %p243 = pneg %p138
        %p244 = pneg %p135
        %s245 = sand.u32 %s125, 1
        %s246 = scalar_lea.sflag [#allocation8], %s245
        %s247 = sand.u32 %s125, 1
        %s248 = smul.addr %s247, 16
        %s249 = scalar_lea.vmem [#allocation11], %s248
        %s250 = sld [smem:[#allocation4 + %s41]]
        %s251 = sadd.s32 %s250, %s42
        %p252 = scmp.lt.s32.totalorder %s251, 2
        %s253 = scalar_select %p252, %s251, 2
        %s254 = sld [smem:[#allocation4 + %s41]]
        %s255 = sadd.s32 %s254, %s42
        %p256 = scmp.lt.s32.totalorder %s255, 2
        %s257 = scalar_select %p256, %s255, 2
        %s258 = smul.u32 16, %s257
        %s259 = smul.u32 2, %s41
        %p260 = scmp.eq.s32.totalorder %s42, 0
        // Predicated region
        $region37: #{tpu_custom_call.1} parent=27 // pred_check
          %p261 = pneg %p260
        $region38: #{tpu_custom_call.1} parent=27 // pred_check_branch
          %263 = sbr.rel (%p261) target = $region40
        $region39: #{tpu_custom_call.1} parent=27 // pred_region
          %264 = vst [vmem:[#allocation2] sm:$0xff] 0.0
          %265 = vst [vmem:[#allocation2 + $0x8] sm:$0xff] 0.0
        $region40: #{tpu_custom_call.1} parent=27 // pred_fallthru
          _
        %s266 = sld [smem:[#allocation5 + %s41]]
        %p267 = scmp.lt.s32.totalorder %s42, %s266
        // Predicated region
        $region41: #{tpu_custom_call.1} parent=27 // pred_check
          %p268 = pneg %p267
        $region42: #{tpu_custom_call.1} parent=27 // pred_check_branch
          %270 = sbr.rel (%p268) target = $region44
        $region43: #{tpu_custom_call.1} parent=27 // pred_region
          %s271 = smul.u32 %s41, 16
          %v272 = vld [vmem:[%s214] sm:$0x1]
          %v273 = vstv %s271
          %v274 = vsub.s32 %v272, %v273
          %v275 = vlaneseq
          %v276 = vshrl.u32 %v275, 7
          %v277 = vadd.s32 %v276, 8
          %v278 = vperm.slane %v274, 0
          %vm279 = vcmp.eq.s32.totalorder %v276, %v278
          %vm280 = vcmp.eq.s32.totalorder %v277, %v278
          %v281 = vsel %vm279, 1, 0
          %v282 = vsel %vm280, 1, 0
          %v283 = vcvt.s32.f32 %v281
          %v284 = vcvt.s32.f32 %v282
          %v285 = vld [vmem:[#allocation2] sm:$0xff]
          %v286 = vld [vmem:[#allocation2 + $0x8] sm:$0xff]
          %v287 = vld [vmem:[%s224] sm:$0xff]
          %v288 = vld [vmem:[%s224 + $0x8] sm:$0xff]
          %v289 = vld [vmem:[%s224 + $0x10] sm:$0xff]
          %v290 = vld [vmem:[%s224 + $0x18] sm:$0xff]
          %v291 = vld [vmem:[%s224 + $0x20] sm:$0xff]
          %v292 = vld [vmem:[%s224 + $0x28] sm:$0xff]
          %v293 = vld [vmem:[%s224 + $0x30] sm:$0xff]
          %v294 = vld [vmem:[%s224 + $0x38] sm:$0xff]
          %v295 = vld [vmem:[%s224 + $0x40] sm:$0xff]
          %v296 = vld [vmem:[%s224 + $0x48] sm:$0xff]
          %v297 = vld [vmem:[%s224 + $0x50] sm:$0xff]
          %v298 = vld [vmem:[%s224 + $0x58] sm:$0xff]
          %v299 = vld [vmem:[%s224 + $0x60] sm:$0xff]
          %v300 = vld [vmem:[%s224 + $0x68] sm:$0xff]
          %v301 = vld [vmem:[%s224 + $0x70] sm:$0xff]
          %v302 = vld [vmem:[%s224 + $0x78] sm:$0xff]
          %303 = vmatpush.msra.mxu0 %v302
          %304 = vmatpush.msra.mxu0 %v301
          %305 = vmatpush.msra.mxu0 %v300
          %306 = vmatpush.msra.mxu0 %v299
          %307 = vmatpush.msra.mxu0 %v298
          %308 = vmatpush.msra.mxu0 %v297
          %309 = vmatpush.msra.mxu0 %v296
          %310 = vmatpush.msra.mxu0 %v295
          %311 = vmatpush.msra.mxu0 %v294
          %312 = vmatpush.msra.mxu0 %v293
          %313 = vmatpush.msra.mxu0 %v292
          %314 = vmatpush.msra.mxu0 %v291
          %315 = vmatpush.msra.mxu0 %v290
          %316 = vmatpush.msra.mxu0 %v289
          %317 = vmatpush.msra.mxu0 %v288
          %318 = vmatpush.msra.mxu0 %v287
          %319 = vmatmul.f32.gmra.mxu0 %v283
          %v320 = vpop.f32.mrf.mxu0
          %v321 = vadd.f32 0.0, %v320
          %322 = vmatmul.f32.gmra.mxu0 %v284
          %v323 = vpop.f32.mrf.mxu0
          %v324 = vadd.f32 0.0, %v323
          %325 = vdwg.mxu0
          %v326 = vadd.f32 %v285, %v321
          %v327 = vadd.f32 %v286, %v324
          %328 = vst [vmem:[#allocation2] sm:$0xff] %v326
          %329 = vst [vmem:[#allocation2 + $0x8] sm:$0xff] %v327
        $region44: #{tpu_custom_call.1} parent=27 // pred_fallthru
          _
        %p330 = scmp.eq.s32.totalorder %s42, 1
        // Predicated region
        $region45: #{tpu_custom_call.1} parent=27 // pred_check
          %p331 = pneg %p330
        $region46: #{tpu_custom_call.1} parent=27 // pred_check_branch
          %333 = sbr.rel (%p331) target = $region48
        $region47: #{tpu_custom_call.1} parent=27 // pred_region
          %v334 = vld [vmem:[#allocation2] sm:$0xff]
          %v335 = vld [vmem:[#allocation2 + $0x8] sm:$0xff]
          %336 = vst [vmem:[%s249] sm:$0xff] %v334
          %337 = vst [vmem:[%s249 + $0x8] sm:$0xff] %v335
        $region48: #{tpu_custom_call.1} parent=27 // pred_fallthru
          _
        %s338 = sand.u32 %s125, 1
        %s339 = scalar_lea.sflag [#allocation8], %s338
        %s340 = sand.u32 %s125, 1
        %s341 = smul.addr %s340, 16
        %s342 = scalar_lea.vmem [#allocation11], %s341
        // Predicated region
        $region49: #{tpu_custom_call.1} parent=27 // pred_check
          %p343 = pneg %p135
        $region50: #{tpu_custom_call.1} parent=27 // pred_check_branch
          %345 = sbr.rel (%p343) target = $region52
        $region51: #{tpu_custom_call.1} parent=27 // pred_region
          %s346 = smul.u32 2, %s41
          %348 = vsyncadd %s339, 0
          %s349 = smul.addr %s346, 8
          %s350 = scalar_lea.hbm %s4, %s349
          %s351 = sshll.u32 %s342, 4
          %s352 = int_to_ptr.vmem [resolvable:$true] %s351
          %s353 = sshll.u32 %s350, 4
          %s354 = int_to_ptr.hbm [resolvable:$true] %s353
          %359 = dma.vmem_to_hbm [thread:$0]  %s352, 256, %s354, %s339, 128, 128, 8
        $region52: #{tpu_custom_call.1} parent=27 // pred_fallthru
          _
      $region28: #{tpu_custom_call.1} parent=5 // pred_fallthru
        _
      %p360 = scmp.le.s32.totalorder 2, %s32
      // Predicated region
      $region53: #{tpu_custom_call.1} parent=5 // pred_check
        %p361 = pneg %p360
      $region54: #{tpu_custom_call.1} parent=5 // pred_check_branch
        %363 = sbr.rel (%p361) target = $region56
      $region55: #{tpu_custom_call.1} parent=5 // pred_region
        %s364 = ssub.s32 %s32, 2
        // Predicated region
        $region57: #{tpu_custom_call.1} parent=55 // pred_check
          %p365 = pneg %p141
        $region58: #{tpu_custom_call.1} parent=55 // pred_check_branch
          %367 = sbr.rel (%p365) target = $region60
        $region59: #{tpu_custom_call.1} parent=55 // pred_region
          %s368 = sand.u32 %s126, 1
          %s369 = scalar_lea.sflag [#allocation8], %s368
          %s370 = sand.u32 %s126, 1
          %s371 = smul.addr %s370, 16
          %s372 = scalar_lea.vmem [#allocation11], %s371
          %374 = dma.done %s369, 256
        $region60: #{tpu_custom_call.1} parent=55 // pred_fallthru
          _
      $region56: #{tpu_custom_call.1} parent=5 // pred_fallthru
        _
    $region6: #{tpu_custom_call.1} parent=1 // loop_footer
      %s36 = sadd.s32 1, %s32
    $region7: #{tpu_custom_call.1} parent=1 // loop_footer_branch
      %31 = sbr.rel target = $region3
    $region8: #{tpu_custom_call.1} parent=1 // loop_exit
      _
    %375 = vsyncpa [#allocation7], 1
    %s376 = scalar_lea.sflag [#allocation7], 1
    %377 = vsyncpa %s376, 1
    %378 = vsyncpa [#allocation10], 1
    %s379 = scalar_lea.sflag [#allocation10], 1
    %380 = vsyncpa %s379, 1
    %381 = vsyncpa [#allocation8], 1
    %s382 = scalar_lea.sflag [#allocation8], 1
    %383 = vsyncpa %s382, 1

</llo_original>
